<compile_context>
chip_gen: v7x
topology: tpu7x:2x2x1
jax: 0.10.0
libtpu: 0.0.40
codegen_flags: <defaults>
</compile_context>

<pallas_src>
import functools

import jax
import jax.numpy as jnp
from jax import lax
from jax.experimental import pallas as pl
from jax.experimental.pallas import tpu as pltpu

_NEG = -1e30      # finite "minus infinity" so masked lanes stay NaN-free
_LANES = 128      # vreg lane width; lane-dense accumulator width


def _round_up(x, m):
    return ((x + m - 1) // m) * m


def _cdiv(a, b):
    return -(-a // b)


def _supcon_kernel(gr_ref, gc_ref, q_ref, kt_ref, out_ref,
                   m_scr, l_scr, num_scr, cnt_scr,
                   *, tm, tn, n_cols_valid, has_col_pad):
    """One (row_block i, col_block j) step of the online-LSE SupCon forward."""
    i = pl.program_id(0)
    j = pl.program_id(1)
    ngroups = tn // _LANES

    @pl.when(j == 0)
    def _init():
        m_scr[...] = jnp.full(m_scr.shape, _NEG, dtype=jnp.float32)
        l_scr[...] = jnp.zeros(l_scr.shape, dtype=jnp.float32)
        num_scr[...] = jnp.zeros(num_scr.shape, dtype=jnp.float32)
        cnt_scr[...] = jnp.zeros(cnt_scr.shape, dtype=jnp.float32)

    # [tm, tn] logits tile on the MXU (bf16 in, f32 accumulate).  1/temperature was folded
    # into q by the wrapper, so no per-tile scaling pass is needed here.
    s = jnp.dot(q_ref[...], kt_ref[...], preferred_element_type=jnp.float32)

    # Positive-pair mask tile from group ids ([tm,1] vs [1,tn] broadcast compare).
    pos_base = gr_ref[...] == gc_ref[...]

    def _accumulate(s_kept, pos):
        # Lane-dense online LSE: every lane slot keeps its own running max / sum-exp /
        # positive sums, so the per-tile work is pure elementwise VALU/EUP (no XLU passes,
        # no lane broadcasts).  Cross-lane merge happens once per row block in _finalize.
        tile_max = s_kept[:, 0:_LANES]
        for g in range(1, ngroups):
            tile_max = jnp.maximum(tile_max, s_kept[:, g * _LANES:(g + 1) * _LANES])
        m_new = jnp.maximum(m_scr[...], tile_max)
        l_acc = jnp.exp(m_scr[...] - m_new) * l_scr[...]
        num_acc = num_scr[...]
        cnt_acc = cnt_scr[...]
        for g in range(ngroups):
            sg = s_kept[:, g * _LANES:(g + 1) * _LANES]
            pg = pos[:, g * _LANES:(g + 1) * _LANES]
            l_acc = l_acc + jnp.exp(sg - m_new)
            num_acc = num_acc + jnp.where(pg, sg, 0.0)
            cnt_acc = cnt_acc + jnp.where(pg, 1.0, 0.0)
        m_scr[...] = m_new
        l_scr[...] = l_acc
        num_scr[...] = num_acc
        cnt_scr[...] = cnt_acc

    # Self-contrast / padding masking is only needed on tiles intersecting the diagonal band
    # (<= 1 per row block) or the padded last column block; everything else is select-free.
    delta = j * tn - i * tm                 # (row_local - col_local) of the diagonal here
    on_band = jnp.logical_and(delta > -tn, delta < tm)
    if has_col_pad:
        need_mask = jnp.logical_or(on_band, j == pl.num_programs(1) - 1)
    else:
        need_mask = on_band

    @pl.when(need_mask)
    def _masked_tile():
        rows = lax.broadcasted_iota(jnp.int32, (tm, tn), 0)
        cols = lax.broadcasted_iota(jnp.int32, (tm, tn), 1)
        keep = (rows - cols) != delta                       # drop self-contrast
        pos = jnp.logical_and(pos_base, keep)
        if has_col_pad:                                     # static: only when cols padded
            valid = cols < (n_cols_valid - j * tn)          # drop padded columns
            keep = jnp.logical_and(keep, valid)
            pos = jnp.logical_and(pos, valid)
        _accumulate(jnp.where(keep, s, _NEG), pos)

    @pl.when(jnp.logical_not(need_mask))
    def _fast_tile():
        _accumulate(s, pos_base)

    @pl.when(j == pl.num_programs(1) - 1)
    def _finalize():
        # Single cross-lane merge per row block.
        m_lane = m_scr[...]
        m_row = jnp.max(m_lane, axis=1, keepdims=True)
        l_row = jnp.sum(l_scr[...] * jnp.exp(m_lane - m_row), axis=1, keepdims=True)
        lse = m_row + jnp.log(l_row)
        num_row = jnp.sum(num_scr[...], axis=1, keepdims=True)
        cnt_row = jnp.sum(cnt_scr[...], axis=1, keepdims=True)
        # mean_log_prob_pos = sum(mask*logits)/sum(mask) - logsumexp.
        # 0/0 -> NaN for anchors with no positives (matches the PyTorch reference); padded
        # rows (also NaN) are sliced off in the wrapper before the mean.
        out_ref[...] = num_row / cnt_row - lse


def supcon_loss_pallas(features, labels=None, mask=None, temperature=0.07,
                       contrast_mode="all", base_temperature=0.07,
                       block_rows=512, block_cols=512,
                       matmul_dtype=jnp.bfloat16):
    """JAX/Pallas port of SupConLoss.forward (labels or SimCLR; 'all' and 'one' modes)."""
    if features.ndim < 3:
        raise ValueError("`features` needs to be [bsz, n_views, ...]")
    if features.ndim > 3:
        features = features.reshape(features.shape[0], features.shape[1], -1)
    bsz, n_views, dim = features.shape

    if labels is not None and mask is not None:
        raise ValueError("Cannot define both `labels` and `mask`")
    if mask is not None:
        # TODO(synk): explicit (possibly asymmetric) [bsz, bsz] mask path is not wired into
        # the tiled kernel; only labels / SimCLR (labels=None) group-id masks are supported.
        raise NotImplementedError("explicit `mask` not supported by the Pallas kernel")
    if labels is None:
        groups = jnp.arange(bsz, dtype=jnp.int32)           # SimCLR: each sample its own class
    else:
        groups = jnp.asarray(labels).reshape(-1).astype(jnp.int32)
        if groups.shape[0] != bsz:
            raise ValueError("Num of labels does not match num of features")

    # contrast_feature = cat(unbind(features, dim=1), dim=0) -> [n_views*bsz, dim] (view-major)
    n_cols = n_views * bsz
    cf = jnp.transpose(features, (1, 0, 2)).reshape(n_cols, dim)
    col_groups = jnp.tile(groups, (n_views,))

    if contrast_mode == "all":
        anchor, row_groups, n_rows = cf, col_groups, n_cols
    elif contrast_mode == "one":
        anchor, row_groups, n_rows = cf[:bsz], groups, bsz
    else:
        raise ValueError("Unknown mode: {}".format(contrast_mode))

    # ---- tiling ---------------------------------------------------------------------------
    # Balanced tiles (minimal padding waste); >= 2 row blocks whenever possible so the
    # "parallel" row axis can shard across both v7x TensorCores; columns padded to a multiple
    # of 128 so the lane-dense accumulators always see full lane groups.
    # (On v5e, pass block_cols=256 if [tm,tn] temporaries spill; kt could also use
    #  pipeline_mode=pl.Buffered(3) there if the DMA is exposed.)
    row_blocks = max(_cdiv(n_rows, block_rows), 2 if n_rows >= 16 else 1)
    tm = _round_up(_cdiv(n_rows, row_blocks), 8)
    n_rows_pad = _round_up(n_rows, tm)
    col_blocks = _cdiv(n_cols, block_cols)
    tn = _round_up(_cdiv(n_cols, col_blocks), _LANES)
    n_cols_pad = _round_up(n_cols, tn)
    has_col_pad = n_cols_pad != n_cols

    # Fold 1/temperature into the anchor once (removes a [tm, tn] multiply per tile) and feed
    # the MXU bf16 operands (f32 accumulate happens in the kernel's jnp.dot).
    inv_temp = 1.0 / float(temperature)
    q = (anchor * inv_temp).astype(matmul_dtype)             # [n_rows, dim]
    kt = cf.T.astype(matmul_dtype)                           # [dim, n_cols], K on sublanes

    if n_rows_pad != n_rows:
        q = jnp.pad(q, ((0, n_rows_pad - n_rows), (0, 0)))
        row_groups = jnp.pad(row_groups, (0, n_rows_pad - n_rows), constant_values=-1)
    if n_cols_pad != n_cols:
        kt = jnp.pad(kt, ((0, 0), (0, n_cols_pad - n_cols)))
        col_groups = jnp.pad(col_groups, (0, n_cols_pad - n_cols), constant_values=-1)

    gr = row_groups.reshape(n_rows_pad, 1).astype(jnp.int32)
    gc = col_groups.reshape(1, n_cols_pad).astype(jnp.int32)

    grid = (n_rows_pad // tm, n_cols_pad // tn)

    # VMEM budget derived from the actual tiling (capped at 48 MiB -> also fits v7x 64 MiB/TC).
    itemsize = jnp.dtype(matmul_dtype).itemsize
    est = (2 * (tm * dim + dim * tn) * itemsize   # double-buffered q / kt tiles
           + 2 * (tm + tn) * 4 + 2 * tm * 4       # group ids + output
           + 4 * tm * _LANES * 4                  # lane-dense accumulators
           + 8 * tm * tn * 4)                     # live [tm, tn] f32 temporaries (headroom)
    vmem_limit = int(min(max(est + (8 << 20), 32 << 20), 48 << 20))

    kernel = functools.partial(_supcon_kernel, tm=tm, tn=tn,
                               n_cols_valid=n_cols, has_col_pad=has_col_pad)

    mlpp = pl.pallas_call(
        kernel,
        out_shape=jax.ShapeDtypeStruct((n_rows_pad, 1), jnp.float32),
        grid_spec=pltpu.PrefetchScalarGridSpec(
            num_scalar_prefetch=0,
            grid=grid,
            in_specs=[
                pl.BlockSpec((tm, 1), lambda i, j: (i, 0)),      # row group ids
                pl.BlockSpec((1, tn), lambda i, j: (0, j)),      # col group ids
                pl.BlockSpec((tm, dim), lambda i, j: (i, 0)),    # anchor rows   X_i   [tm, D]
                pl.BlockSpec((dim, tn), lambda i, j: (0, j)),    # contrast cols X^T_j [D, tn]
            ],
            out_specs=pl.BlockSpec((tm, 1), lambda i, j: (i, 0)),
            scratch_shapes=[pltpu.VMEM((tm, _LANES), jnp.float32)] * 4,  # m, l, num, cnt
        ),
        compiler_params=pltpu.CompilerParams(
            dimension_semantics=("parallel", "arbitrary"),
            vmem_limit_bytes=vmem_limit,
        ),
    )(gr, gc, q, kt)

    mean_log_prob_pos = mlpp[:n_rows, 0]                      # drop padding rows
    loss = -(temperature / base_temperature) * mean_log_prob_pos
    return jnp.mean(loss)


# ------------------------------------------------------------------------------------------
# Pure-JAX reference mirroring the PyTorch module (for testing only).  matmul_dtype=None uses
# the original f32/HIGHEST path; a dtype mirrors the kernel's operand preparation exactly.
# ------------------------------------------------------------------------------------------
def supcon_loss_ref(features, labels=None, temperature=0.07, base_temperature=0.07,
                    contrast_mode="all", matmul_dtype=None):
    bsz, n_views, dim = features.shape
    if labels is None:
        base_mask = jnp.eye(bsz, dtype=jnp.float32)
    else:
        lab = jnp.asarray(labels).reshape(-1, 1)
        base_mask = (lab == lab.T).astype(jnp.float32)
    cf = jnp.transpose(features, (1, 0, 2)).reshape(n_views * bsz, dim)
    if contrast_mode == "one":
        anchor, anchor_count = cf[:bsz], 1
    else:
        anchor, anchor_count = cf, n_views
    if matmul_dtype is None:
        adc = jnp.matmul(anchor, cf.T, precision=jax.lax.Precision.HIGHEST) / temperature
    else:
        adc = jnp.matmul((anchor * (1.0 / float(temperature))).astype(matmul_dtype),
                         cf.T.astype(matmul_dtype),
                         preferred_element_type=jnp.float32)
    logits = adc - jnp.max(adc, axis=1, keepdims=True)
    m = jnp.tile(base_mask, (anchor_count, n_views))
    n_rows = anchor_count * bsz
    logits_mask = jnp.ones_like(m).at[jnp.arange(n_rows), jnp.arange(n_rows)].set(0.0)
    m = m * logits_mask
    exp_logits = jnp.exp(logits) * logits_mask
    log_prob = logits - jnp.log(jnp.sum(exp_logits, axis=1, keepdims=True))
    mlpp = jnp.sum(m * log_prob, axis=1) / jnp.sum(m, axis=1)
    loss = -(temperature / base_temperature) * mlpp
    return jnp.mean(loss)


if __name__ == "__main__":
    key = jax.random.PRNGKey(0)
    k1, k2, k3, k4, k5, k6 = jax.random.split(key, 6)

    def _check(a, b, tag, atol=1e-3, rtol=1e-3):
        a = jax.block_until_ready(a)
        b = jax.block_until_ready(b)
        assert bool(jnp.isfinite(a)), (tag, a)
        assert jnp.allclose(a, b, atol=atol, rtol=rtol), (tag, a, b)

    # --- small shapes: 1-2 block path ------------------------------------------------------
    bsz, n_views, dim = 8, 2, 32
    feats = jax.random.normal(k1, (bsz, n_views, dim), dtype=jnp.float32)
    feats = feats / jnp.linalg.norm(feats, axis=-1, keepdims=True)   # SupCon expects L2-norm
    labels = jax.random.randint(k2, (bsz,), 0, 3)

    # f32 MXU path vs the original f32 reference (tight tolerance).
    _check(supcon_loss_pallas(feats, matmul_dtype=jnp.float32),
           supcon_loss_ref(feats), "simclr_all_f32")
    _check(supcon_loss_pallas(feats, contrast_mode="one", matmul_dtype=jnp.float32),
           supcon_loss_ref(feats, contrast_mode="one"), "simclr_one_f32")
    _check(supcon_loss_pallas(feats, labels=labels, matmul_dtype=jnp.float32),
           supcon_loss_ref(feats, labels=labels), "supervised_all_f32")

    # bf16 MXU path (default) vs bf16-matched reference (tight) and f32 reference (loose).
    _check(supcon_loss_pallas(feats, labels=labels),
           supcon_loss_ref(feats, labels=labels, matmul_dtype=jnp.bfloat16),
           "supervised_all_bf16")
    _check(supcon_loss_pallas(feats, labels=labels),
           supcon_loss_ref(feats, labels=labels), "supervised_all_bf16_vs_f32",
           atol=5e-2, rtol=5e-2)

    # --- moderate shapes: tiled grid, online LSE, diag-band gating, row/col padding ---------
    bsz2, n_views2, dim2 = 72, 2, 32
    feats2 = jax.random.normal(k3, (bsz2, n_views2, dim2), dtype=jnp.float32)
    feats2 = feats2 / jnp.linalg.norm(feats2, axis=-1, keepdims=True)
    labels2 = jax.random.randint(k4, (bsz2,), 0, 3)

    _check(supcon_loss_pallas(feats2, block_rows=64, block_cols=128, matmul_dtype=jnp.float32),
           supcon_loss_ref(feats2), "simclr_all_tiled_f32")
    _check(supcon_loss_pallas(feats2, labels=labels2, block_rows=64, block_cols=128,
                              matmul_dtype=jnp.float32),
           supcon_loss_ref(feats2, labels=labels2), "supervised_all_tiled_f32")
    _check(supcon_loss_pallas(feats2, labels=labels2),   # default blocks -> tn=256, 2 lane groups
           supcon_loss_ref(feats2, labels=labels2, matmul_dtype=jnp.bfloat16),
           "supervised_all_default_bf16")
    _check(supcon_loss_pallas(feats2, labels=labels2, contrast_mode="one"),
           supcon_loss_ref(feats2, labels=labels2, contrast_mode="one",
                           matmul_dtype=jnp.bfloat16),
           "supervised_one_bf16")

    # --- larger grid with no column padding: exercises the select-free fast path ------------
    bsz3, n_views3, dim3 = 128, 2, 32
    feats3 = jax.random.normal(k5, (bsz3, n_views3, dim3), dtype=jnp.float32)
    feats3 = feats3 / jnp.linalg.norm(feats3, axis=-1, keepdims=True)
    labels3 = jax.random.randint(k6, (bsz3,), 0, 5)

    _check(supcon_loss_pallas(feats3, labels=labels3, block_rows=64, block_cols=128,
                              matmul_dtype=jnp.float32),
           supcon_loss_ref(feats3, labels=labels3), "supervised_fastpath_f32")
    _check(supcon_loss_pallas(feats3, block_rows=64, block_cols=128),
           supcon_loss_ref(feats3, matmul_dtype=jnp.bfloat16), "simclr_fastpath_bf16")

    print("KERNEL_OK")
</pallas_src>

<mosaic_0001>
module attributes {stable_mosaic.version = 11 : i64} {
  func.func @_supcon_kernel(%arg0: i32, %arg1: i32, %arg2: memref<8x1xi32, #tpu.memory_space<vmem>>, %arg3: memref<1x128xi32, #tpu.memory_space<vmem>>, %arg4: memref<8x32xf32, #tpu.memory_space<vmem>>, %arg5: memref<32x128xf32, #tpu.memory_space<vmem>>, %arg6: memref<8x1xf32, #tpu.memory_space<vmem>>, %arg7: memref<8x128xf32, #tpu.memory_space<vmem>>, %arg8: memref<8x128xf32, #tpu.memory_space<vmem>>, %arg9: memref<8x128xf32, #tpu.memory_space<vmem>>, %arg10: memref<8x128xf32, #tpu.memory_space<vmem>>) attributes {dimension_semantics = [#tpu.dimension_semantics<parallel>, #tpu.dimension_semantics<arbitrary>], iteration_bounds = array<i64: 2, 1>, scalar_prefetch = 0 : i64, scratch_operands = 4 : i64, tpu.core_type = #tpu.core_type<tc>, window_params = [{transform_indices = @transform_0, window_bounds = array<i64: 8, 1>}, {transform_indices = @transform_1, window_bounds = array<i64: 1, 128>}, {transform_indices = @transform_2, window_bounds = array<i64: 8, 32>}, {transform_indices = @transform_3, window_bounds = array<i64: 32, 128>}, {transform_indices = @transform_4, window_bounds = array<i64: 8, 1>}]} {
    %c0_i32 = arith.constant 0 : i32
    %0 = arith.cmpi eq, %arg1, %c0_i32 : i32
    %1 = arith.extui %0 : i1 to i32
    %c0_i32_0 = arith.constant 0 : i32
    %2 = arith.cmpi ne, %1, %c0_i32_0 : i32
    scf.if %2 {
      %cst_14 = arith.constant -1.000000e+30 : f32
      %27 = vector.broadcast %cst_14 : f32 to vector<8x128xf32>
      %c0_15 = arith.constant 0 : index
      %c0_16 = arith.constant 0 : index
      %28 = vector.load %arg7[%c0_15, %c0_16] : memref<8x128xf32, #tpu.memory_space<vmem>>, vector<8x128xf32>
      tpu.vector_store %arg7[%c0_15, %c0_16], %27 {strides = array<i32>} : memref<8x128xf32, #tpu.memory_space<vmem>>, vector<8x128xf32>,
      %cst_17 = arith.constant 0.000000e+00 : f32
      %29 = vector.broadcast %cst_17 : f32 to vector<8x128xf32>
      %c0_18 = arith.constant 0 : index
      %c0_19 = arith.constant 0 : index
      %30 = vector.load %arg8[%c0_18, %c0_19] : memref<8x128xf32, #tpu.memory_space<vmem>>, vector<8x128xf32>
      tpu.vector_store %arg8[%c0_18, %c0_19], %29 {strides = array<i32>} : memref<8x128xf32, #tpu.memory_space<vmem>>, vector<8x128xf32>,
      %cst_20 = arith.constant 0.000000e+00 : f32
      %31 = vector.broadcast %cst_20 : f32 to vector<8x128xf32>
      %c0_21 = arith.constant 0 : index
      %c0_22 = arith.constant 0 : index
      %32 = vector.load %arg9[%c0_21, %c0_22] : memref<8x128xf32, #tpu.memory_space<vmem>>, vector<8x128xf32>
      tpu.vector_store %arg9[%c0_21, %c0_22], %31 {strides = array<i32>} : memref<8x128xf32, #tpu.memory_space<vmem>>, vector<8x128xf32>,
      %cst_23 = arith.constant 0.000000e+00 : f32
      %33 = vector.broadcast %cst_23 : f32 to vector<8x128xf32>
      %c0_24 = arith.constant 0 : index
      %c0_25 = arith.constant 0 : index
      %34 = vector.load %arg10[%c0_24, %c0_25] : memref<8x128xf32, #tpu.memory_space<vmem>>, vector<8x128xf32>
      tpu.vector_store %arg10[%c0_24, %c0_25], %33 {strides = array<i32>} : memref<8x128xf32, #tpu.memory_space<vmem>>, vector<8x128xf32>,
    } else {
    }
    %c0 = arith.constant 0 : index
    %c0_1 = arith.constant 0 : index
    %3 = vector.load %arg4[%c0, %c0_1] : memref<8x32xf32, #tpu.memory_space<vmem>>, vector<8x32xf32>
    %c0_2 = arith.constant 0 : index
    %c0_3 = arith.constant 0 : index
    %4 = vector.load %arg5[%c0_2, %c0_3] : memref<32x128xf32, #tpu.memory_space<vmem>>, vector<32x128xf32>
    %cst = arith.constant dense<0.000000e+00> : vector<8x128xf32>
    %5 = tpu.matmul %3, %4, %cst {dimension_numbers = #tpu.dot_dimension_numbers<[1], [0], [0], [1], [0, 0, 1, 1], [], []>} : vector<8x32xf32>, vector<32x128xf32>, vector<8x128xf32> -> vector<8x128xf32>
    %c0_4 = arith.constant 0 : index
    %c0_5 = arith.constant 0 : index
    %6 = vector.load %arg2[%c0_4, %c0_5] : memref<8x1xi32, #tpu.memory_space<vmem>>, vector<8x1xi32>
    %c0_6 = arith.constant 0 : index
    %c0_7 = arith.constant 0 : index
    %7 = vector.load %arg3[%c0_6, %c0_7] : memref<1x128xi32, #tpu.memory_space<vmem>>, vector<1x128xi32>
    %8 = vector.broadcast %6 : vector<8x1xi32> to vector<8x128xi32>
    %9 = vector.broadcast %7 : vector<1x128xi32> to vector<8x128xi32>
    %10 = arith.cmpi eq, %8, %9 : vector<8x128xi32>
    %c128_i32 = arith.constant 128 : i32
    %11 = arith.muli %arg1, %c128_i32 : i32
    %c8_i32 = arith.constant 8 : i32
    %12 = arith.muli %arg0, %c8_i32 : i32
    %13 = arith.subi %11, %12 : i32
    %c-128_i32 = arith.constant -128 : i32
    %14 = arith.cmpi sgt, %13, %c-128_i32 : i32
    %c8_i32_8 = arith.constant 8 : i32
    %15 = arith.cmpi slt, %13, %c8_i32_8 : i32
    %16 = arith.andi %14, %15 : i1
    %c0_i32_9 = arith.constant 0 : i32
    %17 = arith.cmpi eq, %arg1, %c0_i32_9 : i32
    %18 = arith.ori %16, %17 : i1
    %19 = arith.extui %18 : i1 to i32
    %c0_i32_10 = arith.constant 0 : i32
    %20 = arith.cmpi ne, %19, %c0_i32_10 : i32
    scf.if %20 {
      %27 = tpu.iota {dimensions = array<i32: 0>} : vector<8x128xi32>
      %28 = tpu.iota {dimensions = array<i32: 1>} : vector<8x128xi32>
      %29 = arith.subi %27, %28 : vector<8x128xi32>
      %30 = vector.broadcast %13 : i32 to vector<8x128xi32>
      %31 = arith.cmpi ne, %29, %30 : vector<8x128xi32>
      %32 = arith.andi %10, %31 : vector<8x128xi1>
      %c128_i32_14 = arith.constant 128 : i32
      %33 = arith.muli %arg1, %c128_i32_14 : i32
      %c16_i32 = arith.constant 16 : i32
      %34 = arith.subi %c16_i32, %33 : i32
      %35 = vector.broadcast %34 : i32 to vector<8x128xi32>
      %36 = arith.cmpi slt, %28, %35 : vector<8x128xi32>
      %37 = arith.andi %31, %36 : vector<8x128xi1>
      %38 = arith.andi %32, %36 : vector<8x128xi1>
      %cst_15 = arith.constant -1.000000e+30 : f32
      %39 = vector.broadcast %cst_15 : f32 to vector<8x128xf32>
      %40 = arith.select %37, %5, %39 : vector<8x128xi1>, vector<8x128xf32>
      %c0_16 = arith.constant 0 : index
      %c0_17 = arith.constant 0 : index
      %41 = vector.load %arg7[%c0_16, %c0_17] : memref<8x128xf32, #tpu.memory_space<vmem>>, vector<8x128xf32>
      %42 = arith.maximumf %41, %40 : vector<8x128xf32>
      %c0_18 = arith.constant 0 : index
      %c0_19 = arith.constant 0 : index
      %43 = vector.load %arg7[%c0_18, %c0_19] : memref<8x128xf32, #tpu.memory_space<vmem>>, vector<8x128xf32>
      %44 = arith.subf %43, %42 : vector<8x128xf32>
      %45 = math.exp %44 : vector<8x128xf32>
      %c0_20 = arith.constant 0 : index
      %c0_21 = arith.constant 0 : index
      %46 = vector.load %arg8[%c0_20, %c0_21] : memref<8x128xf32, #tpu.memory_space<vmem>>, vector<8x128xf32>
      %47 = arith.mulf %45, %46 : vector<8x128xf32>
      %c0_22 = arith.constant 0 : index
      %c0_23 = arith.constant 0 : index
      %48 = vector.load %arg9[%c0_22, %c0_23] : memref<8x128xf32, #tpu.memory_space<vmem>>, vector<8x128xf32>
      %c0_24 = arith.constant 0 : index
      %c0_25 = arith.constant 0 : index
      %49 = vector.load %arg10[%c0_24, %c0_25] : memref<8x128xf32, #tpu.memory_space<vmem>>, vector<8x128xf32>
      %50 = arith.subf %40, %42 : vector<8x128xf32>
      %51 = math.exp %50 : vector<8x128xf32>
      %52 = arith.addf %47, %51 : vector<8x128xf32>
      %cst_26 = arith.constant 0.000000e+00 : f32
      %53 = vector.broadcast %cst_26 : f32 to vector<8x128xf32>
      %54 = arith.select %38, %40, %53 : vector<8x128xi1>, vector<8x128xf32>
      %55 = arith.addf %48, %54 : vector<8x128xf32>
      %cst_27 = arith.constant 1.000000e+00 : f32
      %cst_28 = arith.constant 0.000000e+00 : f32
      %56 = vector.broadcast %cst_27 : f32 to vector<8x128xf32>
      %57 = vector.broadcast %cst_28 : f32 to vector<8x128xf32>
      %58 = arith.select %38, %56, %57 : vector<8x128xi1>, vector<8x128xf32>
      %59 = arith.addf %49, %58 : vector<8x128xf32>
      %c0_29 = arith.constant 0 : index
      %c0_30 = arith.constant 0 : index
      %60 = vector.load %arg7[%c0_29, %c0_30] : memref<8x128xf32, #tpu.memory_space<vmem>>, vector<8x128xf32>
      tpu.vector_store %arg7[%c0_29, %c0_30], %42 {strides = array<i32>} : memref<8x128xf32, #tpu.memory_space<vmem>>, vector<8x128xf32>,
      %c0_31 = arith.constant 0 : index
      %c0_32 = arith.constant 0 : index
      %61 = vector.load %arg8[%c0_31, %c0_32] : memref<8x128xf32, #tpu.memory_space<vmem>>, vector<8x128xf32>
      tpu.vector_store %arg8[%c0_31, %c0_32], %52 {strides = array<i32>} : memref<8x128xf32, #tpu.memory_space<vmem>>, vector<8x128xf32>,
      %c0_33 = arith.constant 0 : index
      %c0_34 = arith.constant 0 : index
      %62 = vector.load %arg9[%c0_33, %c0_34] : memref<8x128xf32, #tpu.memory_space<vmem>>, vector<8x128xf32>
      tpu.vector_store %arg9[%c0_33, %c0_34], %55 {strides = array<i32>} : memref<8x128xf32, #tpu.memory_space<vmem>>, vector<8x128xf32>,
      %c0_35 = arith.constant 0 : index
      %c0_36 = arith.constant 0 : index
      %63 = vector.load %arg10[%c0_35, %c0_36] : memref<8x128xf32, #tpu.memory_space<vmem>>, vector<8x128xf32>
      tpu.vector_store %arg10[%c0_35, %c0_36], %59 {strides = array<i32>} : memref<8x128xf32, #tpu.memory_space<vmem>>, vector<8x128xf32>,
    } else {
    }
    %true = arith.constant true
    %21 = arith.xori %18, %true : i1
    %22 = arith.extui %21 : i1 to i32
    %c0_i32_11 = arith.constant 0 : i32
    %23 = arith.cmpi ne, %22, %c0_i32_11 : i32
    scf.if %23 {
      %c0_14 = arith.constant 0 : index
      %c0_15 = arith.constant 0 : index
      %27 = vector.load %arg7[%c0_14, %c0_15] : memref<8x128xf32, #tpu.memory_space<vmem>>, vector<8x128xf32>
      %28 = arith.maximumf %27, %5 : vector<8x128xf32>
      %c0_16 = arith.constant 0 : index
      %c0_17 = arith.constant 0 : index
      %29 = vector.load %arg7[%c0_16, %c0_17] : memref<8x128xf32, #tpu.memory_space<vmem>>, vector<8x128xf32>
      %30 = arith.subf %29, %28 : vector<8x128xf32>
      %31 = math.exp %30 : vector<8x128xf32>
      %c0_18 = arith.constant 0 : index
      %c0_19 = arith.constant 0 : index
      %32 = vector.load %arg8[%c0_18, %c0_19] : memref<8x128xf32, #tpu.memory_space<vmem>>, vector<8x128xf32>
      %33 = arith.mulf %31, %32 : vector<8x128xf32>
      %c0_20 = arith.constant 0 : index
      %c0_21 = arith.constant 0 : index
      %34 = vector.load %arg9[%c0_20, %c0_21] : memref<8x128xf32, #tpu.memory_space<vmem>>, vector<8x128xf32>
      %c0_22 = arith.constant 0 : index
      %c0_23 = arith.constant 0 : index
      %35 = vector.load %arg10[%c0_22, %c0_23] : memref<8x128xf32, #tpu.memory_space<vmem>>, vector<8x128xf32>
      %36 = arith.subf %5, %28 : vector<8x128xf32>
      %37 = math.exp %36 : vector<8x128xf32>
      %38 = arith.addf %33, %37 : vector<8x128xf32>
      %cst_24 = arith.constant 0.000000e+00 : f32
      %39 = vector.broadcast %cst_24 : f32 to vector<8x128xf32>
      %40 = arith.select %10, %5, %39 : vector<8x128xi1>, vector<8x128xf32>
      %41 = arith.addf %34, %40 : vector<8x128xf32>
      %cst_25 = arith.constant 1.000000e+00 : f32
      %cst_26 = arith.constant 0.000000e+00 : f32
      %42 = vector.broadcast %cst_25 : f32 to vector<8x128xf32>
      %43 = vector.broadcast %cst_26 : f32 to vector<8x128xf32>
      %44 = arith.select %10, %42, %43 : vector<8x128xi1>, vector<8x128xf32>
      %45 = arith.addf %35, %44 : vector<8x128xf32>
      %c0_27 = arith.constant 0 : index
      %c0_28 = arith.constant 0 : index
      %46 = vector.load %arg7[%c0_27, %c0_28] : memref<8x128xf32, #tpu.memory_space<vmem>>, vector<8x128xf32>
      tpu.vector_store %arg7[%c0_27, %c0_28], %28 {strides = array<i32>} : memref<8x128xf32, #tpu.memory_space<vmem>>, vector<8x128xf32>,
      %c0_29 = arith.constant 0 : index
      %c0_30 = arith.constant 0 : index
      %47 = vector.load %arg8[%c0_29, %c0_30] : memref<8x128xf32, #tpu.memory_space<vmem>>, vector<8x128xf32>
      tpu.vector_store %arg8[%c0_29, %c0_30], %38 {strides = array<i32>} : memref<8x128xf32, #tpu.memory_space<vmem>>, vector<8x128xf32>,
      %c0_31 = arith.constant 0 : index
      %c0_32 = arith.constant 0 : index
      %48 = vector.load %arg9[%c0_31, %c0_32] : memref<8x128xf32, #tpu.memory_space<vmem>>, vector<8x128xf32>
      tpu.vector_store %arg9[%c0_31, %c0_32], %41 {strides = array<i32>} : memref<8x128xf32, #tpu.memory_space<vmem>>, vector<8x128xf32>,
      %c0_33 = arith.constant 0 : index
      %c0_34 = arith.constant 0 : index
      %49 = vector.load %arg10[%c0_33, %c0_34] : memref<8x128xf32, #tpu.memory_space<vmem>>, vector<8x128xf32>
      tpu.vector_store %arg10[%c0_33, %c0_34], %45 {strides = array<i32>} : memref<8x128xf32, #tpu.memory_space<vmem>>, vector<8x128xf32>,
    } else {
    }
    %c0_i32_12 = arith.constant 0 : i32
    %24 = arith.cmpi eq, %arg1, %c0_i32_12 : i32
    %25 = arith.extui %24 : i1 to i32
    %c0_i32_13 = arith.constant 0 : i32
    %26 = arith.cmpi ne, %25, %c0_i32_13 : i32
    scf.if %26 {
      %c0_14 = arith.constant 0 : index
      %c0_15 = arith.constant 0 : index
      %27 = vector.load %arg7[%c0_14, %c0_15] : memref<8x128xf32, #tpu.memory_space<vmem>>, vector<8x128xf32>
      %cst_16 = arith.constant dense<0xFF800000> : vector<8xf32>
      %28 = vector.multi_reduction <maximumf>, %27, %cst_16 [1] : vector<8x128xf32> to vector<8xf32>
      %29 = vector.shape_cast %28 : vector<8xf32> to vector<8x1xf32>
      %c0_17 = arith.constant 0 : index
      %c0_18 = arith.constant 0 : index
      %30 = vector.load %arg8[%c0_17, %c0_18] : memref<8x128xf32, #tpu.memory_space<vmem>>, vector<8x128xf32>
      %31 = vector.broadcast %29 : vector<8x1xf32> to vector<8x128xf32>
      %32 = arith.subf %27, %31 : vector<8x128xf32>
      %33 = math.exp %32 : vector<8x128xf32>
      %34 = arith.mulf %30, %33 : vector<8x128xf32>
      %cst_19 = arith.constant dense<0.000000e+00> : vector<8xf32>
      %35 = vector.multi_reduction <add>, %34, %cst_19 [1] : vector<8x128xf32> to vector<8xf32>
      %36 = vector.shape_cast %35 : vector<8xf32> to vector<8x1xf32>
      %37 = math.log %36 : vector<8x1xf32>
      %38 = arith.addf %29, %37 : vector<8x1xf32>
      %c0_20 = arith.constant 0 : index
      %c0_21 = arith.constant 0 : index
      %39 = vector.load %arg9[%c0_20, %c0_21] : memref<8x128xf32, #tpu.memory_space<vmem>>, vector<8x128xf32>
      %cst_22 = arith.constant dense<0.000000e+00> : vector<8xf32>
      %40 = vector.multi_reduction <add>, %39, %cst_22 [1] : vector<8x128xf32> to vector<8xf32>
      %41 = vector.shape_cast %40 : vector<8xf32> to vector<8x1xf32>
      %c0_23 = arith.constant 0 : index
      %c0_24 = arith.constant 0 : index
      %42 = vector.load %arg10[%c0_23, %c0_24] : memref<8x128xf32, #tpu.memory_space<vmem>>, vector<8x128xf32>
      %cst_25 = arith.constant dense<0.000000e+00> : vector<8xf32>
      %43 = vector.multi_reduction <add>, %42, %cst_25 [1] : vector<8x128xf32> to vector<8xf32>
      %44 = vector.shape_cast %43 : vector<8xf32> to vector<8x1xf32>
      %45 = arith.divf %41, %44 : vector<8x1xf32>
      %46 = arith.subf %45, %38 : vector<8x1xf32>
      %c0_26 = arith.constant 0 : index
      %c0_27 = arith.constant 0 : index
      %47 = vector.load %arg6[%c0_26, %c0_27] : memref<8x1xf32, #tpu.memory_space<vmem>>, vector<8x1xf32>
      tpu.vector_store %arg6[%c0_26, %c0_27], %46 {strides = array<i32>} : memref<8x1xf32, #tpu.memory_space<vmem>>, vector<8x1xf32>,
    } else {
    }
    return
  }
  func.func @transform_0(%arg0: i32, %arg1: i32) -> (i32, i32) {
    %c0_i32 = arith.constant 0 : i32
    %c0_i32_0 = arith.constant 0 : i32
    return %arg0, %c0_i32 : i32, i32
  }
  func.func @transform_1(%arg0: i32, %arg1: i32) -> (i32, i32) {
    %c0_i32 = arith.constant 0 : i32
    %c0_i32_0 = arith.constant 0 : i32
    return %c0_i32, %arg1 : i32, i32
  }
  func.func @transform_2(%arg0: i32, %arg1: i32) -> (i32, i32) {
    %c0_i32 = arith.constant 0 : i32
    %c0_i32_0 = arith.constant 0 : i32
    return %arg0, %c0_i32 : i32, i32
  }
  func.func @transform_3(%arg0: i32, %arg1: i32) -> (i32, i32) {
    %c0_i32 = arith.constant 0 : i32
    %c0_i32_0 = arith.constant 0 : i32
    return %c0_i32, %arg1 : i32, i32
  }
  func.func @transform_4(%arg0: i32, %arg1: i32) -> (i32, i32) {
    %c0_i32 = arith.constant 0 : i32
    %c0_i32_0 = arith.constant 0 : i32
    return %arg0, %c0_i32 : i32, i32
  }
}

</mosaic_0001>

<llo_original>
// kernel: tpu_custom_call.1
$region0: #{tpu_custom_call.1}
  #allocation0 [shape = 'u32[]', space=smem, size = 0x4, offset = 0x4, fixed_abs, tag = 'smem constant byte address 0x4 - core index']
  #allocation1 [shape = 'u32[144,128]{1,0:T(1,128)}', space=vmem, size = 0x12000, scoped, tag = 'internal scratch']
  #allocation2 [shape = 'f32[8,128]{1,0:T(8,128)}', space=vmem, size = 0x1000, scoped, tag = 'scratch operand']
  #allocation3 [shape = 'f32[8,128]{1,0:T(8,128)}', space=vmem, size = 0x1000, scoped, tag = 'scratch operand']
  #allocation4 [shape = 'f32[8,128]{1,0:T(8,128)}', space=vmem, size = 0x1000, scoped, tag = 'scratch operand']
  #allocation5 [shape = 'f32[8,128]{1,0:T(8,128)}', space=vmem, size = 0x1000, scoped, tag = 'scratch operand']
  %s0 = inlined_call_operand.vmem [shape: s32[16,1], index: 0, kind: input, shape index: {}]
  %s1 = inlined_call_operand.vmem [shape: s32[1,128], index: 1, kind: input, shape index: {}]
  %s2 = inlined_call_operand.vmem [shape: f32[16,32], index: 2, kind: input, shape index: {}]
  %s3 = inlined_call_operand.hbm [shape: f32[32,128], index: 3, kind: input, shape index: {}]
  %s4 = inlined_call_operand.vmem [shape: f32[16,1], index: 4, kind: output, shape index: {}]
  %s5 = sld [smem:[#allocation0]]
  $region69: #{tpu_custom_call.1} parent=0
    _
  %s7 = ssub.s32 1, %s5
  %s8 = scalar_select 0, %s7, %s5
  $region1: #{tpu_custom_call.1} parent=0
    #allocation6 [shape = 'u8[16384]{0}', space=vmem, size = 0x4000, scoped, tag = 'input window, operand 3, single buffered']
    #allocation7 [shape = 's32[2]{0}', space=sflag, size = 0x8, scoped, tag = 'scoped memory for tpu_custom_call.1']
    %9 = vsyncpa [#allocation7], 0
    loop: start=0, step=1, limit=4
    $region2: #{tpu_custom_call.1} parent=1 // loop_pre_header
      _
    $region3: #{tpu_custom_call.1} parent=1 // loop_header
      %s11 = sphi 0, %s15
      %p12 = scmp.ge.s32.totalorder %s11, 4
      %s18 = sphi 0, %s30
      %s19 = sphi 0, %s26
      %s20 = sphi 0, %s18
      %s21 = sphi 0, %s19
      %s22 = sphi 0, %s20
      %s23 = sphi 0, %s21
      %s33 = sphi 0, %s35
      %s36 = sphi 0, %s33
      %s37 = sphi 0, %s36
      %s53 = sphi 0, %s37
      %s59 = sphi 0, %s61
      %s62 = sphi 0, %s59
      %s63 = sphi 0, %s62
      %s79 = sphi 0, %s63
      %s85 = sphi 0, %s87
      %s88 = sphi 0, %s85
      %s89 = sphi 0, %s88
      %s105 = sphi 0, %s89
      %s111 = sphi 0, %s113
      %s114 = sphi 0, %s111
      %s115 = sphi 0, %s114
      %s131 = sphi 0, %s115
      %s137 = sphi 0, %s139
      %s140 = sphi 0, %s137
      %s141 = sphi 0, %s140
      %s157 = sphi 0, %s141
    $region4: #{tpu_custom_call.1} parent=1 // loop_header_branch
      %14 = sbr.rel (%p12) target = $region8
    $region5: #{tpu_custom_call.1} parent=1 // loop_body
      %s16 = ssub.s32 %s11, 1
      %s17 = ssub.s32 %s11, 2
      %s24 = sadd.s32 1, %s19
      %p25 = scmp.ge.s32.totalorder %s24, 1
      %s26 = scalar_select %p25, 0, %s24
      %s27 = sadd.s32 1, %s18
      %s28 = scalar_select %p25, %s27, %s18
      %p29 = scmp.ge.s32.totalorder %s28, 2
      %s30 = scalar_select %p29, 0, %s28
      %s31 = ssub.s32 %s18, %s30
      %p32 = scmp.eq.s32.totalorder %s31, 0
      %s34 = sadd.s32 %s33, 1
      %s35 = scalar_select %p32, %s33, %s34
      %p38 = pneg %p32
      %p39 = scmp.eq.s32.totalorder %s11, 1
      %p40 = por %p38, %p39
      %p41 = scmp.ne.s32.totalorder %s33, %s36
      %p42 = scmp.eq.s32.totalorder %s11, 0
      %p43 = por %p41, %p42
      %p44 = scmp.ne.s32.totalorder %s33, %s36
      %p45 = scmp.eq.s32.totalorder %s16, 1
      %p46 = por %p44, %p45
      %p47 = scmp.ne.s32.totalorder %s36, %s37
      %p48 = scmp.eq.s32.totalorder %s16, 0
      %p49 = por %p47, %p48
      %p50 = scmp.ne.s32.totalorder %s36, %s37
      %p51 = scmp.eq.s32.totalorder %s17, 1
      %p52 = por %p50, %p51
      %p54 = scmp.ne.s32.totalorder %s37, %s53
      %p55 = scmp.eq.s32.totalorder %s17, 0
      %p56 = por %p54, %p55
      %s57 = ssub.s32 %s19, %s26
      %p58 = scmp.eq.s32.totalorder %s57, 0
      %s60 = sadd.s32 %s59, 1
      %s61 = scalar_select %p58, %s59, %s60
      %p64 = pneg %p58
      %p65 = scmp.eq.s32.totalorder %s11, 1
      %p66 = por %p64, %p65
      %p67 = scmp.ne.s32.totalorder %s59, %s62
      %p68 = scmp.eq.s32.totalorder %s11, 0
      %p69 = por %p67, %p68
      %p70 = scmp.ne.s32.totalorder %s59, %s62
      %p71 = scmp.eq.s32.totalorder %s16, 1
      %p72 = por %p70, %p71
      %p73 = scmp.ne.s32.totalorder %s62, %s63
      %p74 = scmp.eq.s32.totalorder %s16, 0
      %p75 = por %p73, %p74
      %p76 = scmp.ne.s32.totalorder %s62, %s63
      %p77 = scmp.eq.s32.totalorder %s17, 1
      %p78 = por %p76, %p77
      %p80 = scmp.ne.s32.totalorder %s63, %s79
      %p81 = scmp.eq.s32.totalorder %s17, 0
      %p82 = por %p80, %p81
      %s83 = ssub.s32 %s18, %s30
      %p84 = scmp.eq.s32.totalorder %s83, 0
      %s86 = sadd.s32 %s85, 1
      %s87 = scalar_select %p84, %s85, %s86
      %p90 = pneg %p84
      %p91 = scmp.eq.s32.totalorder %s11, 1
      %p92 = por %p90, %p91
      %p93 = scmp.ne.s32.totalorder %s85, %s88
      %p94 = scmp.eq.s32.totalorder %s11, 0
      %p95 = por %p93, %p94
      %p96 = scmp.ne.s32.totalorder %s85, %s88
      %p97 = scmp.eq.s32.totalorder %s16, 1
      %p98 = por %p96, %p97
      %p99 = scmp.ne.s32.totalorder %s88, %s89
      %p100 = scmp.eq.s32.totalorder %s16, 0
      %p101 = por %p99, %p100
      %p102 = scmp.ne.s32.totalorder %s88, %s89
      %p103 = scmp.eq.s32.totalorder %s17, 1
      %p104 = por %p102, %p103
      %p106 = scmp.ne.s32.totalorder %s89, %s105
      %p107 = scmp.eq.s32.totalorder %s17, 0
      %p108 = por %p106, %p107
      %s109 = ssub.s32 %s19, %s26
      %p110 = scmp.eq.s32.totalorder %s109, 0
      %s112 = sadd.s32 %s111, 1
      %s113 = scalar_select %p110, %s111, %s112
      %p116 = pneg %p110
      %p117 = scmp.eq.s32.totalorder %s11, 1
      %p118 = por %p116, %p117
      %p119 = scmp.ne.s32.totalorder %s111, %s114
      %p120 = scmp.eq.s32.totalorder %s11, 0
      %p121 = por %p119, %p120
      %p122 = scmp.ne.s32.totalorder %s111, %s114
      %p123 = scmp.eq.s32.totalorder %s16, 1
      %p124 = por %p122, %p123
      %p125 = scmp.ne.s32.totalorder %s114, %s115
      %p126 = scmp.eq.s32.totalorder %s16, 0
      %p127 = por %p125, %p126
      %p128 = scmp.ne.s32.totalorder %s114, %s115
      %p129 = scmp.eq.s32.totalorder %s17, 1
      %p130 = por %p128, %p129
      %p132 = scmp.ne.s32.totalorder %s115, %s131
      %p133 = scmp.eq.s32.totalorder %s17, 0
      %p134 = por %p132, %p133
      %s135 = ssub.s32 %s18, %s30
      %p136 = scmp.eq.s32.totalorder %s135, 0
      %s138 = sadd.s32 %s137, 1
      %s139 = scalar_select %p136, %s137, %s138
      %p142 = pneg %p136
      %p143 = scmp.eq.s32.totalorder %s11, 1
      %p144 = por %p142, %p143
      %p145 = scmp.ne.s32.totalorder %s137, %s140
      %p146 = scmp.eq.s32.totalorder %s11, 0
      %p147 = por %p145, %p146
      %p148 = scmp.ne.s32.totalorder %s137, %s140
      %p149 = scmp.eq.s32.totalorder %s16, 1
      %p150 = por %p148, %p149
      %p151 = scmp.ne.s32.totalorder %s140, %s141
      %p152 = scmp.eq.s32.totalorder %s16, 0
      %p153 = por %p151, %p152
      %p154 = scmp.ne.s32.totalorder %s140, %s141
      %p155 = scmp.eq.s32.totalorder %s17, 1
      %p156 = por %p154, %p155
      %p158 = scmp.ne.s32.totalorder %s141, %s157
      %p159 = scmp.eq.s32.totalorder %s17, 0
      %p160 = por %p158, %p159
      %p161 = scmp.le.s32.totalorder 1, %s11
      %p162 = scmp.lt.s32.totalorder %s11, 3
      %p163 = pnand %p161, %p162
      %p164 = pneg %p163
      // Predicated region
      $region9: #{tpu_custom_call.1} parent=5 // pred_check
        _
      $region10: #{tpu_custom_call.1} parent=5 // pred_check_branch
        %166 = sbr.rel (%p163) target = $region12
      $region11: #{tpu_custom_call.1} parent=5 // pred_region
        %s167 = ssub.s32 %s11, 1
        // Predicated region
        $region13: #{tpu_custom_call.1} parent=11 // pred_check
          %p168 = pneg %p75
        $region14: #{tpu_custom_call.1} parent=11 // pred_check_branch
          %170 = sbr.rel (%p168) target = $region16
        $region15: #{tpu_custom_call.1} parent=11 // pred_region
          %p171 = scmp.lt.s32.totalorder %s21, 0
          %s172 = scalar_select %p171, %s21, 0
          %s173 = scalar_lea.vmem %s1, %s172
        $region16: #{tpu_custom_call.1} parent=11 // pred_fallthru
          _
        // Predicated region
        $region17: #{tpu_custom_call.1} parent=11 // pred_check
          %p174 = pneg %p127
        $region18: #{tpu_custom_call.1} parent=11 // pred_check_branch
          %176 = sbr.rel (%p174) target = $region20
        $region19: #{tpu_custom_call.1} parent=11 // pred_region
          %s178 = ssub.s32 512, 512
          %179 = vsyncadd [#allocation7], %s178
          %s180 = smul.addr %s21, 128
          %s181 = scalar_lea.hbm %s3, %s180
          %s182 = sshll.u32 [#allocation6], 4
          %s183 = int_to_ptr.vmem [resolvable:$true] %s182
          %188 = dma.hbm_to_vmem [thread:$0]  %s181, 512, %s183, [#allocation7], 128, 128, 8
        $region20: #{tpu_custom_call.1} parent=11 // pred_fallthru
          _
      $region12: #{tpu_custom_call.1} parent=5 // pred_fallthru
        _
      %p189 = scmp.lt.s32.totalorder %s11, 2
      // Predicated region
      $region21: #{tpu_custom_call.1} parent=5 // pred_check
        %p190 = pneg %p189
      $region22: #{tpu_custom_call.1} parent=5 // pred_check_branch
        %192 = sbr.rel (%p190) target = $region24
      $region23: #{tpu_custom_call.1} parent=5 // pred_region
        // Predicated region
        $region25: #{tpu_custom_call.1} parent=23 // pred_check
          %p193 = pneg %p43
        $region26: #{tpu_custom_call.1} parent=23 // pred_check_branch
          %195 = sbr.rel (%p193) target = $region28
        $region27: #{tpu_custom_call.1} parent=23 // pred_region
          %p196 = scmp.lt.s32.totalorder %s18, 1
          %s197 = scalar_select %p196, %s18, 1
          %s198 = smul.addr %s197, 8
          %s199 = scalar_lea.vmem %s0, %s198
        $region28: #{tpu_custom_call.1} parent=23 // pred_fallthru
          _
        // Predicated region
        $region29: #{tpu_custom_call.1} parent=23 // pred_check
          %p200 = pneg %p95
        $region30: #{tpu_custom_call.1} parent=23 // pred_check_branch
          %202 = sbr.rel (%p200) target = $region32
        $region31: #{tpu_custom_call.1} parent=23 // pred_region
          %p203 = scmp.lt.s32.totalorder %s18, 1
          %s204 = scalar_select %p203, %s18, 1
          %s205 = smul.addr %s204, 8
          %s206 = scalar_lea.vmem %s2, %s205
        $region32: #{tpu_custom_call.1} parent=23 // pred_fallthru
          _
      $region24: #{tpu_custom_call.1} parent=5 // pred_fallthru
        _
      %p207 = scmp.le.s32.totalorder 1, %s11
      %p208 = scmp.lt.s32.totalorder %s11, 3
      %p209 = pnand %p207, %p208
      %p210 = pneg %p209
      // Predicated region
      $region33: #{tpu_custom_call.1} parent=5 // pred_check
        _
      $region34: #{tpu_custom_call.1} parent=5 // pred_check_branch
        %212 = sbr.rel (%p209) target = $region36
      $region35: #{tpu_custom_call.1} parent=5 // pred_region
        %s213 = ssub.s32 %s11, 1
        // Predicated region
        $region37: #{tpu_custom_call.1} parent=35 // pred_check
          %p214 = pneg %p127
        $region38: #{tpu_custom_call.1} parent=35 // pred_check_branch
          %216 = sbr.rel (%p214) target = $region40
        $region39: #{tpu_custom_call.1} parent=35 // pred_region
          %217 = dma.done [#allocation7], 512
        $region40: #{tpu_custom_call.1} parent=35 // pred_fallthru
          _
        %p218 = scmp.lt.s32.totalorder %s20, 1
        %s219 = scalar_select %p218, %s20, 1
        %s220 = smul.addr %s219, 8
        %s221 = scalar_lea.vmem %s0, %s220
        %p222 = pneg %p49
        %p223 = pneg %p46
        %p224 = scmp.lt.s32.totalorder %s21, 0
        %s225 = scalar_select %p224, %s21, 0
        %s226 = scalar_lea.vmem %s1, %s225
        %p227 = pneg %p75
        %p228 = pneg %p72
        %p229 = scmp.lt.s32.totalorder %s20, 1
        %s230 = scalar_select %p229, %s20, 1
        %s231 = smul.addr %s230, 8
        %s232 = scalar_lea.vmem %s2, %s231
        %p233 = pneg %p101
        %p234 = pneg %p98
        %p235 = pneg %p127
        %p236 = pneg %p124
        %p237 = pneg %p153
        %p238 = pneg %p150
        %p239 = scmp.lt.s32.totalorder %s20, 1
        %s240 = scalar_select %p239, %s20, 1
        %s241 = smul.addr %s240, 8
        %s242 = scalar_lea.vmem %s4, %s241
        %p243 = scmp.lt.s32.totalorder %s20, 1
        %s244 = scalar_select %p243, %s20, 1
        %s245 = smul.addr %s244, 8
        %s246 = scalar_lea.vmem %s0, %s245
        %p247 = scmp.lt.s32.totalorder %s21, 0
        %s248 = scalar_select %p247, %s21, 0
        %s249 = scalar_lea.vmem %s1, %s248
        %p250 = scmp.lt.s32.totalorder %s20, 1
        %s251 = scalar_select %p250, %s20, 1
        %s252 = smul.addr %s251, 8
        %s253 = scalar_lea.vmem %s2, %s252
        %p254 = scmp.lt.s32.totalorder %s20, 1
        %s255 = scalar_select %p254, %s20, 1
        %s256 = smul.addr %s255, 8
        %s257 = scalar_lea.vmem %s4, %s256
        %p258 = scmp.eq.s32.totalorder %s21, 0
        // Predicated region
        $region41: #{tpu_custom_call.1} parent=35 // pred_check
          %p259 = pneg %p258
        $region42: #{tpu_custom_call.1} parent=35 // pred_check_branch
          %261 = sbr.rel (%p259) target = $region44
        $region43: #{tpu_custom_call.1} parent=35 // pred_region
          %262 = vst [vmem:[#allocation2] sm:$0xff] -1e+30
          %263 = vst [vmem:[#allocation3] sm:$0xff] 0.0
          %264 = vst [vmem:[#allocation4] sm:$0xff] 0.0
          %265 = vst [vmem:[#allocation5] sm:$0xff] 0.0
        $region44: #{tpu_custom_call.1} parent=35 // pred_fallthru
          _
        %v266 = vld [vmem:[%s253] sm:$0xff]
        %v267 = vld [vmem:[#allocation6] sm:$0xff]
        %v268 = vld [vmem:[#allocation6 + $0x8] sm:$0xff]
        %v269 = vld [vmem:[#allocation6 + $0x10] sm:$0xff]
        %v270 = vld [vmem:[#allocation6 + $0x18] sm:$0xff]
        %vm271 = vcmask 261120
        %v273 = vsel %vm271, %v266, 0
        %275 = vmatprep.subr.mxu0 0.0
        %276 = vmatpush1.msra.mxu0 %v267
        %277 = vmatprep.subr.mxu0 0.0
        %278 = vmatpush1.msra.mxu0 %v268
        %279 = vmatprep.subr.mxu0 0.0
        %280 = vmatpush1.msra.mxu0 %v269
        %281 = vmatprep.subr.mxu0 0.0
        %282 = vmatpush1.msra.mxu0 %v270
        %283 = vmatprep.subr.mxu0 0.0
        %284 = vmatpush1.msra.mxu0 0.0
        %285 = vmatprep.subr.mxu0 0.0
        %286 = vmatpush1.msra.mxu0 0.0
        %287 = vmatprep.subr.mxu0 0.0
        %288 = vmatpush1.msra.mxu0 0.0
        %289 = vmatprep.subr.mxu0 0.0
        %290 = vmatpush1.msra.mxu0 0.0
        %291 = vmatprep.subr.mxu0 0.0
        %292 = vmatpush1.msra.mxu0 0.0
        %293 = vmatprep.subr.mxu0 0.0
        %294 = vmatpush1.msra.mxu0 0.0
        %295 = vmatprep.subr.mxu0 0.0
        %296 = vmatpush1.msra.mxu0 0.0
        %297 = vmatprep.subr.mxu0 0.0
        %298 = vmatpush1.msra.mxu0 0.0
        %299 = vmatprep.subr.mxu0 0.0
        %300 = vmatpush1.msra.mxu0 0.0
        %301 = vmatprep.subr.mxu0 0.0
        %302 = vmatpush1.msra.mxu0 0.0
        %303 = vmatprep.subr.mxu0 0.0
        %304 = vmatpush1.msra.mxu0 0.0
        %305 = vmatprep.subr.mxu0 0.0
        %306 = vmatpush1.msra.mxu0 0.0
        %307 = vmatprep.subr.mxu0 0.0
        %308 = vmatpush1.msra.mxu0 0.0
        %309 = vmatprep.subr.mxu0 0.0
        %310 = vmatpush1.msra.mxu0 0.0
        %311 = vmatprep.subr.mxu0 0.0
        %312 = vmatpush1.msra.mxu0 0.0
        %313 = vmatprep.subr.mxu0 0.0
        %314 = vmatpush1.msra.mxu0 0.0
        %315 = vmatprep.subr.mxu0 0.0
        %316 = vmatpush1.msra.mxu0 0.0
        %317 = vmatprep.subr.mxu0 0.0
        %318 = vmatpush1.msra.mxu0 0.0
        %319 = vmatprep.subr.mxu0 0.0
        %320 = vmatpush1.msra.mxu0 0.0
        %321 = vmatprep.subr.mxu0 0.0
        %322 = vmatpush1.msra.mxu0 0.0
        %323 = vmatprep.subr.mxu0 0.0
        %324 = vmatpush1.msra.mxu0 0.0
        %325 = vmatprep.subr.mxu0 0.0
        %326 = vmatpush1.msra.mxu0 0.0
        %327 = vmatprep.subr.mxu0 0.0
        %328 = vmatpush1.msra.mxu0 0.0
        %329 = vmatprep.subr.mxu0 0.0
        %330 = vmatpush1.msra.mxu0 0.0
        %331 = vmatprep.subr.mxu0 0.0
        %332 = vmatpush1.msra.mxu0 0.0
        %333 = vmatprep.subr.mxu0 0.0
        %334 = vmatpush1.msra.mxu0 0.0
        %335 = vmatprep.subr.mxu0 0.0
        %336 = vmatpush1.msra.mxu0 0.0
        %337 = vmatprep.subr.mxu0 0.0
        %338 = vmatpush1.msra.mxu0 0.0
        %339 = vmatprep.mubr.f32.mxu0 0.0
        %340 = vmatmul.mubr.f32.gmra.mrb[0].mxu0 %v273
        %v341 = vpop.f32.mrb[0].mxu0
        %v342 = vadd.f32 0.0, %v341
        %v343 = vpop.f32.mrb[0].mxu0
        %344 = vdwg.mxu0
        %v345 = vld [vmem:[%s246] sm:$0xff]
        %v346 = vld [vmem:[%s249] sm:$0x1]
        %347 = vset.pattern.permute.xlu0 0
        %348 = vperm.xlu0 %347, %v345
        %v349 = vpop.permute.xlu0 %348
        %v350 = vlaneseq
        %v351 = vshrl.u32 %v350, 7
        %v352 = vsub.s32 0, %v351
        %v353 = vrot.slane %v346, %v352
        %vm354 = vcmp.eq.s32.totalorder %v349, %v353
        %s355 = smul.u32 %s21, 128
        %s356 = smul.u32 %s20, 8
        %s357 = ssub.s32 %s355, %s356
        %p358 = scmp.gt.s32.totalorder %s357, 4294967168
        %p359 = scmp.lt.s32.totalorder %s357, 8
        %p360 = pnand %p358, %p359
        %p361 = pneg %p360
        %p362 = por %p361, %p258
        // Predicated region
        $region45: #{tpu_custom_call.1} parent=35 // pred_check
          %p363 = pneg %p362
        $region46: #{tpu_custom_call.1} parent=35 // pred_check_branch
          %365 = sbr.rel (%p363) target = $region48
        $region47: #{tpu_custom_call.1} parent=35 // pred_region
          %v366 = vlaneseq
          %v367 = vshrl.u32 %v366, 7
          %v368 = vlaneseq
          %v369 = vand.u32 %v368, 127
          %v370 = vsub.s32 %v367, %v369
          %v371 = vstv %s357
          %vm372 = vcmp.ne.s32.totalorder %v370, %v371
          %vm373 = vmand %vm354, %vm372
          %s374 = ssub.s32 16, %s355
          %v375 = vstv %s374
          %vm376 = vcmp.lt.s32.totalorder %v369, %v375
          %vm377 = vmand %vm372, %vm376
          %vm378 = vmand %vm373, %vm376
          %v379 = vsel %vm377, %v342, -1e+30
          %v380 = vld [vmem:[#allocation2] sm:$0xff]
          %v381 = vmax.f32 %v380, %v379
          %v382 = vsub.f32 %v380, %v381
          %v383 = vmul.f32 %v382, 1.442695
          %v384 = vpow.pop %v383
          %v385 = vld [vmem:[#allocation3] sm:$0xff]
          %v386 = vmul.f32 %v384, %v385
          %v387 = vld [vmem:[#allocation4] sm:$0xff]
          %v388 = vld [vmem:[#allocation5] sm:$0xff]
          %v389 = vsub.f32 %v379, %v381
          %v390 = vmul.f32 %v389, 1.442695
          %v391 = vpow.pop %v390
          %v392 = vadd.f32 %v386, %v391
          %v393 = vsel %vm378, %v379, 0.0
          %v394 = vadd.f32 %v387, %v393
          %v395 = vsel %vm378, 1.0, 0.0
          %v396 = vadd.f32 %v388, %v395
          %397 = vst [vmem:[#allocation2] sm:$0xff] %v381
          %398 = vst [vmem:[#allocation3] sm:$0xff] %v392
          %399 = vst [vmem:[#allocation4] sm:$0xff] %v394
          %400 = vst [vmem:[#allocation5] sm:$0xff] %v396
        $region48: #{tpu_custom_call.1} parent=35 // pred_fallthru
          _
        %p401 = pneg %p362
        // Predicated region
        $region49: #{tpu_custom_call.1} parent=35 // pred_check
          _
        $region50: #{tpu_custom_call.1} parent=35 // pred_check_branch
          %403 = sbr.rel (%p362) target = $region52
        $region51: #{tpu_custom_call.1} parent=35 // pred_region
          %v404 = vld [vmem:[#allocation2] sm:$0xff]
          %v405 = vmax.f32 %v404, %v342
          %v406 = vsub.f32 %v404, %v405
          %v407 = vmul.f32 %v406, 1.442695
          %v408 = vpow.pop %v407
          %v409 = vld [vmem:[#allocation3] sm:$0xff]
          %v410 = vmul.f32 %v408, %v409
          %v411 = vld [vmem:[#allocation4] sm:$0xff]
          %v412 = vld [vmem:[#allocation5] sm:$0xff]
          %v413 = vsub.f32 %v342, %v405
          %v414 = vmul.f32 %v413, 1.442695
          %v415 = vpow.pop %v414
          %v416 = vadd.f32 %v410, %v415
          %v417 = vsel %vm354, %v342, 0.0
          %v418 = vadd.f32 %v411, %v417
          %v419 = vsel %vm354, 1.0, 0.0
          %v420 = vadd.f32 %v412, %v419
          %421 = vst [vmem:[#allocation2] sm:$0xff] %v405
          %422 = vst [vmem:[#allocation3] sm:$0xff] %v416
          %423 = vst [vmem:[#allocation4] sm:$0xff] %v418
          %424 = vst [vmem:[#allocation5] sm:$0xff] %v420
        $region52: #{tpu_custom_call.1} parent=35 // pred_fallthru
          _
        // Predicated region
        $region53: #{tpu_custom_call.1} parent=35 // pred_check
          %p425 = pneg %p258
        $region54: #{tpu_custom_call.1} parent=35 // pred_check_branch
          %427 = sbr.rel (%p425) target = $region56
        $region55: #{tpu_custom_call.1} parent=35 // pred_region
          %v428 = vld [vmem:[#allocation2] sm:$0xff]
          %429 = vmax.xlane.f32.xlu0 %v428
          %v430 = vpop.xlane.xlu0 %429
          %v431 = vld [vmem:[#allocation3] sm:$0xff]
          %v432 = vsub.f32 %v428, %v430
          %v433 = vmul.f32 %v432, 1.442695
          %v434 = vpow.pop %v433
          %v435 = vmul.f32 %v431, %v434
          %436 = vadd.xlane.f32.xlu0 %v435
          %v437 = vpop.xlane.xlu0 %436
          %v438 = vlog2.pop %v437
          %v439 = vmul.f32 %v438, 0.6931472
          %v440 = vadd.f32 %v430, %v439
          %v441 = vld [vmem:[#allocation4] sm:$0xff]
          %442 = vadd.xlane.f32.xlu0 %v441
          %v443 = vpop.xlane.xlu0 %442
          %v444 = vld [vmem:[#allocation5] sm:$0xff]
          %445 = vadd.xlane.f32.xlu0 %v444
          %v446 = vpop.xlane.xlu0 %445
          %v447 = vrcp.pop %v446
          %v448 = vmul.f32 %v443, %v447
          %v449 = vsub.f32 %v448, %v440
          %vm450 = vcmask 7168
          %451 = vst.msk [vmem:[%s257] sm:$0xff] %vm450, %v449
        $region56: #{tpu_custom_call.1} parent=35 // pred_fallthru
          _
        %p452 = scmp.lt.s32.totalorder %s20, 1
        %s453 = scalar_select %p452, %s20, 1
        %s454 = smul.addr %s453, 8
        %s455 = scalar_lea.vmem %s4, %s454
        // Predicated region
        $region57: #{tpu_custom_call.1} parent=35 // pred_check
          %p456 = pneg %p150
        $region58: #{tpu_custom_call.1} parent=35 // pred_check_branch
          %458 = sbr.rel (%p456) target = $region60
        $region59: #{tpu_custom_call.1} parent=35 // pred_region
          _
        $region60: #{tpu_custom_call.1} parent=35 // pred_fallthru
          _
      $region36: #{tpu_custom_call.1} parent=5 // pred_fallthru
        _
      %p459 = scmp.le.s32.totalorder 2, %s11
      // Predicated region
      $region61: #{tpu_custom_call.1} parent=5 // pred_check
        %p460 = pneg %p459
      $region62: #{tpu_custom_call.1} parent=5 // pred_check_branch
        %462 = sbr.rel (%p460) target = $region64
      $region63: #{tpu_custom_call.1} parent=5 // pred_region
        %s463 = ssub.s32 %s11, 2
        // Predicated region
        $region65: #{tpu_custom_call.1} parent=63 // pred_check
          %p464 = pneg %p156
        $region66: #{tpu_custom_call.1} parent=63 // pred_check_branch
          %466 = sbr.rel (%p464) target = $region68
        $region67: #{tpu_custom_call.1} parent=63 // pred_region
          %p467 = scmp.lt.s32.totalorder %s22, 1
          %s468 = scalar_select %p467, %s22, 1
          %s469 = smul.addr %s468, 8
          %s470 = scalar_lea.vmem %s4, %s469
        $region68: #{tpu_custom_call.1} parent=63 // pred_fallthru
          _
      $region64: #{tpu_custom_call.1} parent=5 // pred_fallthru
        _
    $region6: #{tpu_custom_call.1} parent=1 // loop_footer
      %s15 = sadd.s32 1, %s11
    $region7: #{tpu_custom_call.1} parent=1 // loop_footer_branch
      %10 = sbr.rel target = $region3
    $region8: #{tpu_custom_call.1} parent=1 // loop_exit
      _
    %471 = vsyncpa [#allocation7], 1
    %s472 = scalar_lea.sflag [#allocation7], 1
    %473 = vsyncpa %s472, 1

</llo_original>
